<compile_context>
chip_gen: v7x
topology: tpu7x:2x2x1
jax: 0.10.0
libtpu: 0.0.40
codegen_flags: <defaults>
</compile_context>

<pallas_src>
import random

import jax
import jax.numpy as jnp
from jax import lax
from jax.experimental import pallas as pl
from jax.experimental.pallas import tpu as pltpu

# ---------------------------------------------------------------------------
# Model dimensions (small, consistent with a seq2seq forward pass)
# ---------------------------------------------------------------------------
SRC_LEN = 10          # must be >= TGT_LEN (decoder output is indexed by t)
TGT_LEN = 8
BATCH = 4
SRC_VOCAB = 50
TGT_VOCAB = 48        # decoder.output_dim
EMB_DIM = 32
HID_DIM = 32          # encoder.hid_dim == decoder.hid_dim
VOCAB_PAD = 128       # lane-dense padded logits dim


def _vmem_spec():
    return pl.BlockSpec(memory_space=pltpu.MemorySpace.VMEM)


# ---------------------------------------------------------------------------
# Encoder kernel: enc_proj = tanh(x @ W_enc + b_enc) @ W_h + b_h
# (the decoder-side W_h projection is hoisted here since it is loop-invariant)
# ---------------------------------------------------------------------------
def _encoder_kernel(x_ref, w_enc_ref, b_enc_ref, w_h_ref, b_h_ref, o_ref):
    enc = jnp.tanh(
        jnp.dot(x_ref[...], w_enc_ref[...], preferred_element_type=jnp.float32)
        + b_enc_ref[...]
    )
    o_ref[...] = (
        jnp.dot(enc, w_h_ref[...], preferred_element_type=jnp.float32) + b_h_ref[...]
    )


def encoder_pallas(x, w_enc, b_enc, w_h, b_h):
    n = x.shape[0]
    return pl.pallas_call(
        _encoder_kernel,
        out_shape=jax.ShapeDtypeStruct((n, w_h.shape[1]), jnp.float32),
        in_specs=[_vmem_spec()] * 5,
        out_specs=_vmem_spec(),
    )(x, w_enc, b_enc, w_h, b_h)


# ---------------------------------------------------------------------------
# Fused autoregressive decode loop: one pallas_call, grid over t
# ---------------------------------------------------------------------------
def _decode_loop_kernel(use_tf_ref,          # scalar prefetch, SMEM (tgt_len-1,)
                        tgt_oh_ref,          # (1, B, VOCAB_PAD)  teacher-forced token one-hot
                        enc_proj_ref,        # (1, B, HID)        enc_proj rows for position t
                        e_dec_ref,           # (VOCAB_PAD, EMB)
                        w_e_ref,             # (EMB, HID)
                        w_out_ref,           # (HID, VOCAB_PAD)
                        b_out_ref,           # (1, VOCAB_PAD)     padded cols = -1e30
                        out_ref,             # (1, B, VOCAB_PAD)
                        prev_oh_ref):        # VMEM scratch (B, VOCAB_PAD): prev argmax one-hot
    t_idx = pl.program_id(0)

    @pl.when(t_idx == 0)
    def _():
        prev_oh_ref[...] = jnp.zeros_like(prev_oh_ref)

    # Input token one-hot: teacher-forced tgt[t-1] vs previous step's argmax.
    sel = jnp.where(use_tf_ref[t_idx] > 0, 1.0, 0.0).astype(jnp.float32)
    in_oh = sel * tgt_oh_ref[0] + (1.0 - sel) * prev_oh_ref[...]

    # Embedding lookup as a one-hot matmul (MXU-friendly, no in-kernel gather).
    emb_in = jnp.dot(in_oh, e_dec_ref[...], preferred_element_type=jnp.float32)
    h = jnp.tanh(
        enc_proj_ref[0]
        + jnp.dot(emb_in, w_e_ref[...], preferred_element_type=jnp.float32)
    )
    logits = (
        jnp.dot(h, w_out_ref[...], preferred_element_type=jnp.float32)
        + b_out_ref[...]
    )
    out_ref[0] = logits

    # argmax -> one-hot feedback for the next step (first max on ties).
    m = jnp.max(logits, axis=-1, keepdims=True)
    iota = lax.broadcasted_iota(jnp.int32, logits.shape, 1)
    first_idx = jnp.min(
        jnp.where(logits == m, iota, VOCAB_PAD), axis=-1, keepdims=True
    )
    prev_oh_ref[...] = (iota == first_idx).astype(jnp.float32)


def decode_loop_pallas(use_tf, tgt_oh, enc_proj, e_dec_pad, w_e, w_out_pad, b_out_pad):
    tgt_len, batch, _ = tgt_oh.shape
    n_steps = tgt_len - 1
    hid = enc_proj.shape[-1]
    emb = e_dec_pad.shape[-1]

    grid_spec = pltpu.PrefetchScalarGridSpec(
        num_scalar_prefetch=1,
        grid=(n_steps,),
        in_specs=[
            pl.BlockSpec((1, batch, VOCAB_PAD), lambda i, tf: (i, 0, 0)),      # tgt one-hot row t-1
            pl.BlockSpec((1, batch, hid), lambda i, tf: (i + 1, 0, 0)),        # enc_proj row t
            pl.BlockSpec((VOCAB_PAD, emb), lambda i, tf: (0, 0)),              # E_dec (resident)
            pl.BlockSpec((emb, hid), lambda i, tf: (0, 0)),                    # W_e   (resident)
            pl.BlockSpec((hid, VOCAB_PAD), lambda i, tf: (0, 0)),              # W_out (resident)
            pl.BlockSpec((1, VOCAB_PAD), lambda i, tf: (0, 0)),                # b_out (resident)
        ],
        out_specs=pl.BlockSpec((1, batch, VOCAB_PAD), lambda i, tf: (i, 0, 0)),
        scratch_shapes=[pltpu.VMEM((batch, VOCAB_PAD), jnp.float32)],
    )
    return pl.pallas_call(
        _decode_loop_kernel,
        out_shape=jax.ShapeDtypeStruct((n_steps, batch, VOCAB_PAD), jnp.float32),
        grid_spec=grid_spec,
        compiler_params=pltpu.CompilerParams(dimension_semantics=("arbitrary",)),
    )(use_tf, tgt_oh, enc_proj, e_dec_pad, w_e, w_out_pad, b_out_pad)


# ---------------------------------------------------------------------------
# Parameter construction (deterministic) + lane padding
# ---------------------------------------------------------------------------
def init_params(key):
    ks = jax.random.split(key, 9)
    s = 0.1
    return {
        "E_enc": s * jax.random.normal(ks[0], (SRC_VOCAB, EMB_DIM), jnp.float32),
        "W_enc": s * jax.random.normal(ks[1], (EMB_DIM, HID_DIM), jnp.float32),
        "b_enc": s * jax.random.normal(ks[2], (1, HID_DIM), jnp.float32),
        "E_dec": s * jax.random.normal(ks[3], (TGT_VOCAB, EMB_DIM), jnp.float32),
        "W_h": s * jax.random.normal(ks[4], (HID_DIM, HID_DIM), jnp.float32),
        "W_e": s * jax.random.normal(ks[5], (EMB_DIM, HID_DIM), jnp.float32),
        "b_h": s * jax.random.normal(ks[6], (1, HID_DIM), jnp.float32),
        "W_out": s * jax.random.normal(ks[7], (HID_DIM, TGT_VOCAB), jnp.float32),
        "b_out": s * jax.random.normal(ks[8], (1, TGT_VOCAB), jnp.float32),
    }


def pad_params(p):
    q = dict(p)
    q["E_dec_pad"] = (
        jnp.zeros((VOCAB_PAD, EMB_DIM), jnp.float32).at[:TGT_VOCAB].set(p["E_dec"])
    )
    q["W_out_pad"] = (
        jnp.zeros((HID_DIM, VOCAB_PAD), jnp.float32).at[:, :TGT_VOCAB].set(p["W_out"])
    )
    # padded bias columns are very negative so the in-kernel argmax ignores them
    q["b_out_pad"] = (
        jnp.full((1, VOCAB_PAD), -1e30, jnp.float32).at[:, :TGT_VOCAB].set(p["b_out"])
    )
    return q


# ---------------------------------------------------------------------------
# Seq2Seq forward (mirrors the PyTorch control flow)
# ---------------------------------------------------------------------------
@jax.jit
def _seq2seq_forward_jit(params, src, tgt, use_tf):
    src_len, batch = src.shape
    # Encoder (+ hoisted decoder projection).  Embedding gather is XLA glue.
    emb_src = jnp.take(params["E_enc"], src, axis=0)            # (src_len, batch, emb)
    x = emb_src.reshape(src_len * batch, EMB_DIM)
    enc_proj = encoder_pallas(
        x, params["W_enc"], params["b_enc"], params["W_h"], params["b_h"]
    ).reshape(src_len, batch, HID_DIM)

    # Fused autoregressive decode loop.
    tgt_oh = jax.nn.one_hot(tgt, VOCAB_PAD, dtype=jnp.float32)  # (tgt_len, batch, 128)
    steps = decode_loop_pallas(
        use_tf, tgt_oh, enc_proj,
        params["E_dec_pad"], params["W_e"], params["W_out_pad"], params["b_out_pad"],
    )                                                           # (tgt_len-1, batch, 128)

    outputs = jnp.concatenate(
        [jnp.zeros((1, batch, VOCAB_PAD), jnp.float32), steps], axis=0
    )
    return outputs[:, :, :TGT_VOCAB]                            # slice off lane padding


def seq2seq_forward(params_padded, src, tgt, teacher_forcing_ratio=0.5):
    tgt_len = tgt.shape[0]
    # Host-side teacher-forcing draws: same random.random() count and order as the
    # PyTorch loop (one draw per iteration t=1..tgt_len-1; the last is unused).
    flags = [1]                                   # step t=1 always consumes tgt[0]
    for t in range(1, tgt_len):
        tf = random.random() < teacher_forcing_ratio
        if t < tgt_len - 1:
            flags.append(1 if tf else 0)
    use_tf = jnp.asarray(flags, dtype=jnp.int32)  # passed as data, not baked in
    return _seq2seq_forward_jit(params_padded, src, tgt, use_tf)


# ---------------------------------------------------------------------------
if __name__ == "__main__":
    random.seed(0)  # deterministic teacher forcing (mirrors random.random())

    key = jax.random.PRNGKey(0)
    kp, ks, kt = jax.random.split(key, 3)
    params = pad_params(init_params(kp))

    src = jax.random.randint(ks, (SRC_LEN, BATCH), 0, SRC_VOCAB, dtype=jnp.int32)
    tgt = jax.random.randint(kt, (TGT_LEN, BATCH), 0, TGT_VOCAB, dtype=jnp.int32)

    out = seq2seq_forward(params, src, tgt, teacher_forcing_ratio=0.5)
    out = jax.block_until_ready(out)

    assert out.shape == (TGT_LEN, BATCH, TGT_VOCAB)
    assert bool(jnp.all(out[0] == 0.0))           # outputs[0] stays zeros, like torch.zeros
    assert bool(jnp.all(jnp.isfinite(out)))
    print("KERNEL_OK")
</pallas_src>

<mosaic_0001>
module attributes {stable_mosaic.version = 11 : i64} {
  func.func @_encoder_kernel(%arg0: memref<40x32xf32, #tpu.memory_space<vmem>>, %arg1: memref<32x32xf32, #tpu.memory_space<vmem>>, %arg2: memref<1x32xf32, #tpu.memory_space<vmem>>, %arg3: memref<32x32xf32, #tpu.memory_space<vmem>>, %arg4: memref<1x32xf32, #tpu.memory_space<vmem>>, %arg5: memref<40x32xf32, #tpu.memory_space<vmem>>) attributes {dimension_semantics = [], scalar_prefetch = 0 : i64, scratch_operands = 0 : i64, tpu.core_type = #tpu.core_type<tc>} {
    %c0 = arith.constant 0 : index
    %c0_0 = arith.constant 0 : index
    %0 = vector.load %arg0[%c0, %c0_0] : memref<40x32xf32, #tpu.memory_space<vmem>>, vector<40x32xf32>
    %c0_1 = arith.constant 0 : index
    %c0_2 = arith.constant 0 : index
    %1 = vector.load %arg1[%c0_1, %c0_2] : memref<32x32xf32, #tpu.memory_space<vmem>>, vector<32x32xf32>
    %cst = arith.constant dense<0.000000e+00> : vector<40x32xf32>
    %2 = tpu.matmul %0, %1, %cst {dimension_numbers = #tpu.dot_dimension_numbers<[1], [0], [0], [1], [0, 0, 1, 1], [], []>} : vector<40x32xf32>, vector<32x32xf32>, vector<40x32xf32> -> vector<40x32xf32>
    %c0_3 = arith.constant 0 : index
    %c0_4 = arith.constant 0 : index
    %3 = vector.load %arg2[%c0_3, %c0_4] : memref<1x32xf32, #tpu.memory_space<vmem>>, vector<1x32xf32>
    %4 = vector.broadcast %3 : vector<1x32xf32> to vector<40x32xf32>
    %5 = arith.addf %2, %4 : vector<40x32xf32>
    %6 = math.tanh %5 : vector<40x32xf32>
    %c0_5 = arith.constant 0 : index
    %c0_6 = arith.constant 0 : index
    %7 = vector.load %arg3[%c0_5, %c0_6] : memref<32x32xf32, #tpu.memory_space<vmem>>, vector<32x32xf32>
    %cst_7 = arith.constant dense<0.000000e+00> : vector<40x32xf32>
    %8 = tpu.matmul %6, %7, %cst_7 {dimension_numbers = #tpu.dot_dimension_numbers<[1], [0], [0], [1], [0, 0, 1, 1], [], []>} : vector<40x32xf32>, vector<32x32xf32>, vector<40x32xf32> -> vector<40x32xf32>
    %c0_8 = arith.constant 0 : index
    %c0_9 = arith.constant 0 : index
    %9 = vector.load %arg4[%c0_8, %c0_9] : memref<1x32xf32, #tpu.memory_space<vmem>>, vector<1x32xf32>
    %10 = vector.broadcast %9 : vector<1x32xf32> to vector<40x32xf32>
    %11 = arith.addf %8, %10 : vector<40x32xf32>
    %c0_10 = arith.constant 0 : index
    %c0_11 = arith.constant 0 : index
    %12 = vector.load %arg5[%c0_10, %c0_11] : memref<40x32xf32, #tpu.memory_space<vmem>>, vector<40x32xf32>
    tpu.vector_store %arg5[%c0_10, %c0_11], %11 {strides = array<i32>} : memref<40x32xf32, #tpu.memory_space<vmem>>, vector<40x32xf32>,
    return
  }
}

module attributes {stable_mosaic.version = 11 : i64} {
  func.func @_decode_loop_kernel(%arg0: i32, %arg1: memref<7xi32, #tpu.memory_space<smem>>, %arg2: memref<1x4x128xf32, #tpu.memory_space<vmem>>, %arg3: memref<1x4x32xf32, #tpu.memory_space<vmem>>, %arg4: memref<128x32xf32, #tpu.memory_space<vmem>>, %arg5: memref<32x32xf32, #tpu.memory_space<vmem>>, %arg6: memref<32x128xf32, #tpu.memory_space<vmem>>, %arg7: memref<1x128xf32, #tpu.memory_space<vmem>>, %arg8: memref<1x4x128xf32, #tpu.memory_space<vmem>>, %arg9: memref<4x128xf32, #tpu.memory_space<vmem>>) attributes {dimension_semantics = [#tpu.dimension_semantics<arbitrary>], iteration_bounds = array<i64: 7>, scalar_prefetch = 1 : i64, scratch_operands = 1 : i64, tpu.core_type = #tpu.core_type<tc>, window_params = [{transform_indices = @transform_0, window_bounds = array<i64: 1, 4, 128>}, {transform_indices = @transform_1, window_bounds = array<i64: 1, 4, 32>}, {pipeline_mode = #tpu.pipeline_mode<synchronous>, transform_indices = @transform_2, window_bounds = array<i64: 128, 32>}, {pipeline_mode = #tpu.pipeline_mode<synchronous>, transform_indices = @transform_3, window_bounds = array<i64: 32, 32>}, {pipeline_mode = #tpu.pipeline_mode<synchronous>, transform_indices = @transform_4, window_bounds = array<i64: 32, 128>}, {pipeline_mode = #tpu.pipeline_mode<synchronous>, transform_indices = @transform_5, window_bounds = array<i64: 1, 128>}, {transform_indices = @transform_6, window_bounds = array<i64: 1, 4, 128>}]} {
    %c0_i32 = arith.constant 0 : i32
    %0 = arith.cmpi eq, %arg0, %c0_i32 : i32
    %1 = arith.extui %0 : i1 to i32
    %c0_i32_0 = arith.constant 0 : i32
    %2 = arith.cmpi ne, %1, %c0_i32_0 : i32
    scf.if %2 {
      %cst_29 = arith.constant 0.000000e+00 : f32
      %46 = vector.broadcast %cst_29 : f32 to vector<4x128xf32>
      %c0_30 = arith.constant 0 : index
      %c0_31 = arith.constant 0 : index
      %47 = vector.load %arg9[%c0_30, %c0_31] : memref<4x128xf32, #tpu.memory_space<vmem>>, vector<4x128xf32>
      tpu.vector_store %arg9[%c0_30, %c0_31], %46 {strides = array<i32>} : memref<4x128xf32, #tpu.memory_space<vmem>>, vector<4x128xf32>,
    } else {
    }
    %3 = arith.index_cast %arg0 : i32 to index
    %4 = memref.load %arg1[%3] : memref<7xi32, #tpu.memory_space<smem>>
    %c0_i32_1 = arith.constant 0 : i32
    %5 = arith.cmpi sgt, %4, %c0_i32_1 : i32
    %cst = arith.constant 1.000000e+00 : f32
    %cst_2 = arith.constant 0.000000e+00 : f32
    %6 = arith.select %5, %cst, %cst_2 : f32
    %c0 = arith.constant 0 : index
    %c0_3 = arith.constant 0 : index
    %c0_4 = arith.constant 0 : index
    %7 = vector.load %arg2[%c0, %c0_3, %c0_4] : memref<1x4x128xf32, #tpu.memory_space<vmem>>, vector<1x4x128xf32>
    %8 = vector.shape_cast %7 : vector<1x4x128xf32> to vector<4x128xf32>
    %9 = vector.broadcast %6 : f32 to vector<4x128xf32>
    %10 = arith.mulf %9, %8 : vector<4x128xf32>
    %cst_5 = arith.constant 1.000000e+00 : f32
    %11 = arith.subf %cst_5, %6 : f32
    %c0_6 = arith.constant 0 : index
    %c0_7 = arith.constant 0 : index
    %12 = vector.load %arg9[%c0_6, %c0_7] : memref<4x128xf32, #tpu.memory_space<vmem>>, vector<4x128xf32>
    %13 = vector.broadcast %11 : f32 to vector<4x128xf32>
    %14 = arith.mulf %13, %12 : vector<4x128xf32>
    %15 = arith.addf %10, %14 : vector<4x128xf32>
    %c0_8 = arith.constant 0 : index
    %c0_9 = arith.constant 0 : index
    %16 = vector.load %arg4[%c0_8, %c0_9] : memref<128x32xf32, #tpu.memory_space<vmem>>, vector<128x32xf32>
    %cst_10 = arith.constant dense<0.000000e+00> : vector<4x32xf32>
    %17 = tpu.matmul %15, %16, %cst_10 {dimension_numbers = #tpu.dot_dimension_numbers<[1], [0], [0], [1], [0, 0, 1, 1], [], []>} : vector<4x128xf32>, vector<128x32xf32>, vector<4x32xf32> -> vector<4x32xf32>
    %c0_11 = arith.constant 0 : index
    %c0_12 = arith.constant 0 : index
    %c0_13 = arith.constant 0 : index
    %18 = vector.load %arg3[%c0_11, %c0_12, %c0_13] : memref<1x4x32xf32, #tpu.memory_space<vmem>>, vector<1x4x32xf32>
    %19 = vector.shape_cast %18 : vector<1x4x32xf32> to vector<4x32xf32>
    %c0_14 = arith.constant 0 : index
    %c0_15 = arith.constant 0 : index
    %20 = vector.load %arg5[%c0_14, %c0_15] : memref<32x32xf32, #tpu.memory_space<vmem>>, vector<32x32xf32>
    %cst_16 = arith.constant dense<0.000000e+00> : vector<4x32xf32>
    %21 = tpu.matmul %17, %20, %cst_16 {dimension_numbers = #tpu.dot_dimension_numbers<[1], [0], [0], [1], [0, 0, 1, 1], [], []>} : vector<4x32xf32>, vector<32x32xf32>, vector<4x32xf32> -> vector<4x32xf32>
    %22 = arith.addf %19, %21 : vector<4x32xf32>
    %23 = math.tanh %22 : vector<4x32xf32>
    %c0_17 = arith.constant 0 : index
    %c0_18 = arith.constant 0 : index
    %24 = vector.load %arg6[%c0_17, %c0_18] : memref<32x128xf32, #tpu.memory_space<vmem>>, vector<32x128xf32>
    %cst_19 = arith.constant dense<0.000000e+00> : vector<4x128xf32>
    %25 = tpu.matmul %23, %24, %cst_19 {dimension_numbers = #tpu.dot_dimension_numbers<[1], [0], [0], [1], [0, 0, 1, 1], [], []>} : vector<4x32xf32>, vector<32x128xf32>, vector<4x128xf32> -> vector<4x128xf32>
    %c0_20 = arith.constant 0 : index
    %c0_21 = arith.constant 0 : index
    %26 = vector.load %arg7[%c0_20, %c0_21] : memref<1x128xf32, #tpu.memory_space<vmem>>, vector<1x128xf32>
    %27 = vector.broadcast %26 : vector<1x128xf32> to vector<4x128xf32>
    %28 = arith.addf %25, %27 : vector<4x128xf32>
    %c0_22 = arith.constant 0 : index
    %c0_23 = arith.constant 0 : index
    %c0_24 = arith.constant 0 : index
    %29 = vector.load %arg8[%c0_22, %c0_23, %c0_24] : memref<1x4x128xf32, #tpu.memory_space<vmem>>, vector<1x4x128xf32>
    %30 = vector.shape_cast %29 : vector<1x4x128xf32> to vector<4x128xf32>
    %31 = vector.shape_cast %28 : vector<4x128xf32> to vector<1x4x128xf32>
    tpu.vector_store %arg8[%c0_22, %c0_23, %c0_24], %31 {strides = array<i32>} : memref<1x4x128xf32, #tpu.memory_space<vmem>>, vector<1x4x128xf32>,
    %cst_25 = arith.constant dense<0xFF800000> : vector<4xf32>
    %32 = vector.multi_reduction <maximumf>, %28, %cst_25 [1] : vector<4x128xf32> to vector<4xf32>
    %33 = vector.shape_cast %32 : vector<4xf32> to vector<4x1xf32>
    %34 = tpu.iota {dimensions = array<i32: 1>} : vector<4x128xi32>
    %35 = vector.broadcast %33 : vector<4x1xf32> to vector<4x128xf32>
    %36 = arith.cmpf oeq, %28, %35 : vector<4x128xf32>
    %c128_i32 = arith.constant 128 : i32
    %37 = vector.broadcast %c128_i32 : i32 to vector<4x128xi32>
    %38 = arith.select %36, %34, %37 : vector<4x128xi1>, vector<4x128xi32>
    %cst_26 = arith.constant dense<2147483647> : vector<4xi32>
    %39 = vector.multi_reduction <minsi>, %38, %cst_26 [1] : vector<4x128xi32> to vector<4xi32>
    %40 = vector.shape_cast %39 : vector<4xi32> to vector<4x1xi32>
    %41 = vector.broadcast %40 : vector<4x1xi32> to vector<4x128xi32>
    %42 = arith.cmpi eq, %34, %41 : vector<4x128xi32>
    %43 = arith.extui %42 : vector<4x128xi1> to vector<4x128xi32>
    %44 = arith.sitofp %43 : vector<4x128xi32> to vector<4x128xf32>
    %c0_27 = arith.constant 0 : index
    %c0_28 = arith.constant 0 : index
    %45 = vector.load %arg9[%c0_27, %c0_28] : memref<4x128xf32, #tpu.memory_space<vmem>>, vector<4x128xf32>
    tpu.vector_store %arg9[%c0_27, %c0_28], %44 {strides = array<i32>} : memref<4x128xf32, #tpu.memory_space<vmem>>, vector<4x128xf32>,
    return
  }
  func.func @transform_0(%arg0: i32, %arg1: memref<7xi32, #tpu.memory_space<smem>>) -> (i32, i32, i32) {
    %c0_i32 = arith.constant 0 : i32
    %c0_i32_0 = arith.constant 0 : i32
    %c0_i32_1 = arith.constant 0 : i32
    return %arg0, %c0_i32, %c0_i32_0 : i32, i32, i32
  }
  func.func @transform_1(%arg0: i32, %arg1: memref<7xi32, #tpu.memory_space<smem>>) -> (i32, i32, i32) {
    %c1_i32 = arith.constant 1 : i32
    %0 = arith.addi %arg0, %c1_i32 : i32
    %c0_i32 = arith.constant 0 : i32
    %c0_i32_0 = arith.constant 0 : i32
    %c0_i32_1 = arith.constant 0 : i32
    return %0, %c0_i32, %c0_i32_0 : i32, i32, i32
  }
  func.func @transform_2(%arg0: i32, %arg1: memref<7xi32, #tpu.memory_space<smem>>) -> (i32, i32) {
    %c0_i32 = arith.constant 0 : i32
    %c0_i32_0 = arith.constant 0 : i32
    %c0_i32_1 = arith.constant 0 : i32
    return %c0_i32, %c0_i32_0 : i32, i32
  }
  func.func @transform_3(%arg0: i32, %arg1: memref<7xi32, #tpu.memory_space<smem>>) -> (i32, i32) {
    %c0_i32 = arith.constant 0 : i32
    %c0_i32_0 = arith.constant 0 : i32
    %c0_i32_1 = arith.constant 0 : i32
    return %c0_i32, %c0_i32_0 : i32, i32
  }
  func.func @transform_4(%arg0: i32, %arg1: memref<7xi32, #tpu.memory_space<smem>>) -> (i32, i32) {
    %c0_i32 = arith.constant 0 : i32
    %c0_i32_0 = arith.constant 0 : i32
    %c0_i32_1 = arith.constant 0 : i32
    return %c0_i32, %c0_i32_0 : i32, i32
  }
  func.func @transform_5(%arg0: i32, %arg1: memref<7xi32, #tpu.memory_space<smem>>) -> (i32, i32) {
    %c0_i32 = arith.constant 0 : i32
    %c0_i32_0 = arith.constant 0 : i32
    %c0_i32_1 = arith.constant 0 : i32
    return %c0_i32, %c0_i32_0 : i32, i32
  }
  func.func @transform_6(%arg0: i32, %arg1: memref<7xi32, #tpu.memory_space<smem>>) -> (i32, i32, i32) {
    %c0_i32 = arith.constant 0 : i32
    %c0_i32_0 = arith.constant 0 : i32
    %c0_i32_1 = arith.constant 0 : i32
    return %arg0, %c0_i32, %c0_i32_0 : i32, i32, i32
  }
}

</mosaic_0001>

<llo_original>
// kernel: _seq2seq_forward_jit.3
$region0: #{_seq2seq_forward_jit.3}
  #allocation0 [shape = 'u32[]', space=smem, size = 0x4, offset = 0x4, fixed_abs, tag = 'smem constant byte address 0x4 - core index']
  #allocation1 [shape = 'u32[144,128]{1,0:T(1,128)}', space=vmem, size = 0x12000, scoped, tag = 'internal scratch']
  #allocation2 [shape = 'f32[4,128]{1,0:T(4,128)}', space=vmem, size = 0x800, scoped, tag = 'scratch operand']
  #allocation3 [shape = 's32[1]{0}', space=sflag, size = 0x4, scoped, tag = 'scoped memory for _seq2seq_forward_jit.3']
  #allocation4 [shape = 'u8[512]{0}', space=smem, size = 0x200, scoped, tag = 'prefetched SMEM operand 0']
  %s0 = inlined_call_operand.vmem [shape: s32[7], index: 0, kind: input, shape index: {}]
  %s1 = inlined_call_operand.vmem [shape: f32[8,4,128], index: 1, kind: input, shape index: {}]
  %s2 = inlined_call_operand.vmem [shape: f32[10,4,32], index: 2, kind: input, shape index: {}]
  %s3 = inlined_call_operand.vmem [shape: f32[128,32], index: 3, kind: input, shape index: {}]
  %s4 = inlined_call_operand.vmem [shape: f32[32,32], index: 4, kind: input, shape index: {}]
  %s5 = inlined_call_operand.vmem [shape: f32[32,128], index: 5, kind: input, shape index: {}]
  %s6 = inlined_call_operand.vmem [shape: f32[1,128], index: 6, kind: input, shape index: {}]
  %s7 = inlined_call_operand.vmem [shape: f32[7,4,128], index: 7, kind: output, shape index: {}]
  %s8 = sld [smem:[#allocation0]]
  $region61: #{_seq2seq_forward_jit.3} parent=0
    _
  %s10 = ssub.s32 1, %s8
  %s11 = scalar_select 0, %s10, %s8
  %s12 = sshll.u32 %s0, 4
  %s13 = int_to_ptr.vmem [resolvable:$true] %s12
  %15 = dma.vmem_to_smem %s13, 16, [#allocation4], [#allocation3]
  %16 = dma.done [#allocation3], 16
  %17 = sfence
  loop: start=0, step=1, limit=9
  $region2: #{_seq2seq_forward_jit.3} parent=0 // loop_pre_header
    _
  $region3: #{_seq2seq_forward_jit.3} parent=0 // loop_header
    %s19 = sphi 0, %s23
    %p20 = scmp.ge.s32.totalorder %s19, 9
    %s29 = sphi 0, %s31
    %s32 = sphi 0, %s29
    %s33 = sphi 0, %s32
    %s49 = sphi 0, %s33
    %s57 = sphi 0, %s59
    %s60 = sphi 0, %s57
    %s61 = sphi 0, %s60
    %s77 = sphi 0, %s61
    %s81 = sphi 0, %s81
    %s83 = sphi 0, %s81
    %s84 = sphi 0, %s83
    %s98 = sphi 0, %s84
    %s102 = sphi 0, %s102
    %s104 = sphi 0, %s102
    %s105 = sphi 0, %s104
    %s119 = sphi 0, %s105
    %s123 = sphi 0, %s123
    %s125 = sphi 0, %s123
    %s126 = sphi 0, %s125
    %s140 = sphi 0, %s126
    %s144 = sphi 0, %s144
    %s146 = sphi 0, %s144
    %s147 = sphi 0, %s146
    %s161 = sphi 0, %s147
    %s167 = sphi 0, %s169
    %s170 = sphi 0, %s167
    %s171 = sphi 0, %s170
    %s187 = sphi 0, %s171
  $region4: #{_seq2seq_forward_jit.3} parent=0 // loop_header_branch
    %22 = sbr.rel (%p20) target = $region8
  $region5: #{_seq2seq_forward_jit.3} parent=0 // loop_body
    %s24 = ssub.s32 %s19, 1
    %s25 = ssub.s32 %s19, 2
    %s26 = sadd.s32 %s19, 1
    %s27 = ssub.s32 %s19, %s26
    %p28 = scmp.eq.s32.totalorder %s27, 0
    %s30 = sadd.s32 %s29, 1
    %s31 = scalar_select %p28, %s29, %s30
    %p34 = pneg %p28
    %p35 = scmp.eq.s32.totalorder %s19, 6
    %p36 = por %p34, %p35
    %p37 = scmp.ne.s32.totalorder %s29, %s32
    %p38 = scmp.eq.s32.totalorder %s19, 0
    %p39 = por %p37, %p38
    %p40 = scmp.ne.s32.totalorder %s29, %s32
    %p41 = scmp.eq.s32.totalorder %s24, 6
    %p42 = por %p40, %p41
    %p43 = scmp.ne.s32.totalorder %s32, %s33
    %p44 = scmp.eq.s32.totalorder %s24, 0
    %p45 = por %p43, %p44
    %p46 = scmp.ne.s32.totalorder %s32, %s33
    %p47 = scmp.eq.s32.totalorder %s25, 6
    %p48 = por %p46, %p47
    %p50 = scmp.ne.s32.totalorder %s33, %s49
    %p51 = scmp.eq.s32.totalorder %s25, 0
    %p52 = por %p50, %p51
    %s53 = sadd.s32 %s19, 1
    %s54 = sadd.s32 %s26, 1
    %s55 = ssub.s32 %s53, %s54
    %p56 = scmp.eq.s32.totalorder %s55, 0
    %s58 = sadd.s32 %s57, 1
    %s59 = scalar_select %p56, %s57, %s58
    %p62 = pneg %p56
    %p63 = scmp.eq.s32.totalorder %s19, 6
    %p64 = por %p62, %p63
    %p65 = scmp.ne.s32.totalorder %s57, %s60
    %p66 = scmp.eq.s32.totalorder %s19, 0
    %p67 = por %p65, %p66
    %p68 = scmp.ne.s32.totalorder %s57, %s60
    %p69 = scmp.eq.s32.totalorder %s24, 6
    %p70 = por %p68, %p69
    %p71 = scmp.ne.s32.totalorder %s60, %s61
    %p72 = scmp.eq.s32.totalorder %s24, 0
    %p73 = por %p71, %p72
    %p74 = scmp.ne.s32.totalorder %s60, %s61
    %p75 = scmp.eq.s32.totalorder %s25, 6
    %p76 = por %p74, %p75
    %p78 = scmp.ne.s32.totalorder %s61, %s77
    %p79 = scmp.eq.s32.totalorder %s25, 0
    %p80 = por %p78, %p79
    %s82 = sadd.s32 %s81, 1
    %p85 = scmp.eq.s32.totalorder %s19, 6
    %p86 = scmp.ne.s32.totalorder %s81, %s83
    %p87 = scmp.eq.s32.totalorder %s19, 0
    %p88 = por %p86, %p87
    %p89 = scmp.ne.s32.totalorder %s81, %s83
    %p90 = scmp.eq.s32.totalorder %s24, 6
    %p91 = por %p89, %p90
    %p92 = scmp.ne.s32.totalorder %s83, %s84
    %p93 = scmp.eq.s32.totalorder %s24, 0
    %p94 = por %p92, %p93
    %p95 = scmp.ne.s32.totalorder %s83, %s84
    %p96 = scmp.eq.s32.totalorder %s25, 6
    %p97 = por %p95, %p96
    %p99 = scmp.ne.s32.totalorder %s84, %s98
    %p100 = scmp.eq.s32.totalorder %s25, 0
    %p101 = por %p99, %p100
    %s103 = sadd.s32 %s102, 1
    %p106 = scmp.eq.s32.totalorder %s19, 6
    %p107 = scmp.ne.s32.totalorder %s102, %s104
    %p108 = scmp.eq.s32.totalorder %s19, 0
    %p109 = por %p107, %p108
    %p110 = scmp.ne.s32.totalorder %s102, %s104
    %p111 = scmp.eq.s32.totalorder %s24, 6
    %p112 = por %p110, %p111
    %p113 = scmp.ne.s32.totalorder %s104, %s105
    %p114 = scmp.eq.s32.totalorder %s24, 0
    %p115 = por %p113, %p114
    %p116 = scmp.ne.s32.totalorder %s104, %s105
    %p117 = scmp.eq.s32.totalorder %s25, 6
    %p118 = por %p116, %p117
    %p120 = scmp.ne.s32.totalorder %s105, %s119
    %p121 = scmp.eq.s32.totalorder %s25, 0
    %p122 = por %p120, %p121
    %s124 = sadd.s32 %s123, 1
    %p127 = scmp.eq.s32.totalorder %s19, 6
    %p128 = scmp.ne.s32.totalorder %s123, %s125
    %p129 = scmp.eq.s32.totalorder %s19, 0
    %p130 = por %p128, %p129
    %p131 = scmp.ne.s32.totalorder %s123, %s125
    %p132 = scmp.eq.s32.totalorder %s24, 6
    %p133 = por %p131, %p132
    %p134 = scmp.ne.s32.totalorder %s125, %s126
    %p135 = scmp.eq.s32.totalorder %s24, 0
    %p136 = por %p134, %p135
    %p137 = scmp.ne.s32.totalorder %s125, %s126
    %p138 = scmp.eq.s32.totalorder %s25, 6
    %p139 = por %p137, %p138
    %p141 = scmp.ne.s32.totalorder %s126, %s140
    %p142 = scmp.eq.s32.totalorder %s25, 0
    %p143 = por %p141, %p142
    %s145 = sadd.s32 %s144, 1
    %p148 = scmp.eq.s32.totalorder %s19, 6
    %p149 = scmp.ne.s32.totalorder %s144, %s146
    %p150 = scmp.eq.s32.totalorder %s19, 0
    %p151 = por %p149, %p150
    %p152 = scmp.ne.s32.totalorder %s144, %s146
    %p153 = scmp.eq.s32.totalorder %s24, 6
    %p154 = por %p152, %p153
    %p155 = scmp.ne.s32.totalorder %s146, %s147
    %p156 = scmp.eq.s32.totalorder %s24, 0
    %p157 = por %p155, %p156
    %p158 = scmp.ne.s32.totalorder %s146, %s147
    %p159 = scmp.eq.s32.totalorder %s25, 6
    %p160 = por %p158, %p159
    %p162 = scmp.ne.s32.totalorder %s147, %s161
    %p163 = scmp.eq.s32.totalorder %s25, 0
    %p164 = por %p162, %p163
    %s165 = ssub.s32 %s19, %s26
    %p166 = scmp.eq.s32.totalorder %s165, 0
    %s168 = sadd.s32 %s167, 1
    %s169 = scalar_select %p166, %s167, %s168
    %p172 = pneg %p166
    %p173 = scmp.eq.s32.totalorder %s19, 6
    %p174 = por %p172, %p173
    %p175 = scmp.ne.s32.totalorder %s167, %s170
    %p176 = scmp.eq.s32.totalorder %s19, 0
    %p177 = por %p175, %p176
    %p178 = scmp.ne.s32.totalorder %s167, %s170
    %p179 = scmp.eq.s32.totalorder %s24, 6
    %p180 = por %p178, %p179
    %p181 = scmp.ne.s32.totalorder %s170, %s171
    %p182 = scmp.eq.s32.totalorder %s24, 0
    %p183 = por %p181, %p182
    %p184 = scmp.ne.s32.totalorder %s170, %s171
    %p185 = scmp.eq.s32.totalorder %s25, 6
    %p186 = por %p184, %p185
    %p188 = scmp.ne.s32.totalorder %s171, %s187
    %p189 = scmp.eq.s32.totalorder %s25, 0
    %p190 = por %p188, %p189
    %p191 = scmp.le.s32.totalorder 1, %s19
    %p192 = scmp.lt.s32.totalorder %s19, 8
    %p193 = pnand %p191, %p192
    %p194 = pneg %p193
    // Predicated region
    $region9: #{_seq2seq_forward_jit.3} parent=5 // pred_check
      _
    $region10: #{_seq2seq_forward_jit.3} parent=5 // pred_check_branch
      %196 = sbr.rel (%p193) target = $region12
    $region11: #{_seq2seq_forward_jit.3} parent=5 // pred_region
      %s197 = ssub.s32 %s19, 1
      // Predicated region
      $region13: #{_seq2seq_forward_jit.3} parent=11 // pred_check
        %p198 = pneg %p94
      $region14: #{_seq2seq_forward_jit.3} parent=11 // pred_check_branch
        %200 = sbr.rel (%p198) target = $region16
      $region15: #{_seq2seq_forward_jit.3} parent=11 // pred_region
        _
      $region16: #{_seq2seq_forward_jit.3} parent=11 // pred_fallthru
        _
      // Predicated region
      $region17: #{_seq2seq_forward_jit.3} parent=11 // pred_check
        %p201 = pneg %p115
      $region18: #{_seq2seq_forward_jit.3} parent=11 // pred_check_branch
        %203 = sbr.rel (%p201) target = $region20
      $region19: #{_seq2seq_forward_jit.3} parent=11 // pred_region
        _
      $region20: #{_seq2seq_forward_jit.3} parent=11 // pred_fallthru
        _
      // Predicated region
      $region21: #{_seq2seq_forward_jit.3} parent=11 // pred_check
        %p204 = pneg %p136
      $region22: #{_seq2seq_forward_jit.3} parent=11 // pred_check_branch
        %206 = sbr.rel (%p204) target = $region24
      $region23: #{_seq2seq_forward_jit.3} parent=11 // pred_region
        _
      $region24: #{_seq2seq_forward_jit.3} parent=11 // pred_fallthru
        _
      // Predicated region
      $region25: #{_seq2seq_forward_jit.3} parent=11 // pred_check
        %p207 = pneg %p157
      $region26: #{_seq2seq_forward_jit.3} parent=11 // pred_check_branch
        %209 = sbr.rel (%p207) target = $region28
      $region27: #{_seq2seq_forward_jit.3} parent=11 // pred_region
        _
      $region28: #{_seq2seq_forward_jit.3} parent=11 // pred_fallthru
        _
    $region12: #{_seq2seq_forward_jit.3} parent=5 // pred_fallthru
      _
    %p210 = scmp.lt.s32.totalorder %s19, 7
    // Predicated region
    $region29: #{_seq2seq_forward_jit.3} parent=5 // pred_check
      %p211 = pneg %p210
    $region30: #{_seq2seq_forward_jit.3} parent=5 // pred_check_branch
      %213 = sbr.rel (%p211) target = $region32
    $region31: #{_seq2seq_forward_jit.3} parent=5 // pred_region
      // Predicated region
      $region33: #{_seq2seq_forward_jit.3} parent=31 // pred_check
        %p214 = pneg %p39
      $region34: #{_seq2seq_forward_jit.3} parent=31 // pred_check_branch
        %216 = sbr.rel (%p214) target = $region36
      $region35: #{_seq2seq_forward_jit.3} parent=31 // pred_region
        %p217 = scmp.lt.s32.totalorder %s19, 7
        %s218 = scalar_select %p217, %s19, 7
        %s219 = smul.addr %s218, 4
        %s220 = scalar_lea.vmem %s1, %s219
      $region36: #{_seq2seq_forward_jit.3} parent=31 // pred_fallthru
        _
      // Predicated region
      $region37: #{_seq2seq_forward_jit.3} parent=31 // pred_check
        %p221 = pneg %p67
      $region38: #{_seq2seq_forward_jit.3} parent=31 // pred_check_branch
        %223 = sbr.rel (%p221) target = $region40
      $region39: #{_seq2seq_forward_jit.3} parent=31 // pred_region
        %s224 = sadd.s32 %s19, 1
        %p225 = scmp.lt.s32.totalorder %s224, 9
        %s226 = scalar_select %p225, %s224, 9
        %s227 = smul.addr %s226, 4
        %s228 = scalar_lea.vmem %s2, %s227
        %s229 = sadd.s32 %s19, 1
      $region40: #{_seq2seq_forward_jit.3} parent=31 // pred_fallthru
        _
    $region32: #{_seq2seq_forward_jit.3} parent=5 // pred_fallthru
      _
    %p230 = scmp.le.s32.totalorder 1, %s19
    %p231 = scmp.lt.s32.totalorder %s19, 8
    %p232 = pnand %p230, %p231
    %p233 = pneg %p232
    // Predicated region
    $region41: #{_seq2seq_forward_jit.3} parent=5 // pred_check
      _
    $region42: #{_seq2seq_forward_jit.3} parent=5 // pred_check_branch
      %235 = sbr.rel (%p232) target = $region44
    $region43: #{_seq2seq_forward_jit.3} parent=5 // pred_region
      %s236 = ssub.s32 %s19, 1
      %p237 = scmp.lt.s32.totalorder %s24, 7
      %s238 = scalar_select %p237, %s24, 7
      %s239 = smul.addr %s238, 4
      %s240 = scalar_lea.vmem %s1, %s239
      %p241 = pneg %p45
      %p242 = pneg %p42
      %s243 = sadd.s32 %s24, 1
      %p244 = scmp.lt.s32.totalorder %s243, 9
      %s245 = scalar_select %p244, %s243, 9
      %s246 = smul.addr %s245, 4
      %s247 = scalar_lea.vmem %s2, %s246
      %p248 = pneg %p73
      %p249 = pneg %p70
      %p250 = pneg %p94
      %p251 = pneg %p91
      %p252 = pneg %p115
      %p253 = pneg %p112
      %p254 = pneg %p136
      %p255 = pneg %p133
      %p256 = pneg %p157
      %p257 = pneg %p154
      %p258 = pneg %p183
      %p259 = pneg %p180
      %p260 = scmp.lt.s32.totalorder %s24, 6
      %s261 = scalar_select %p260, %s24, 6
      %s262 = smul.addr %s261, 4
      %s263 = scalar_lea.vmem %s7, %s262
      %p264 = scmp.lt.s32.totalorder %s24, 7
      %s265 = scalar_select %p264, %s24, 7
      %s266 = smul.addr %s265, 4
      %s267 = scalar_lea.vmem %s1, %s266
      %s268 = sadd.s32 %s24, 1
      %p269 = scmp.lt.s32.totalorder %s268, 9
      %s270 = scalar_select %p269, %s268, 9
      %s271 = smul.addr %s270, 4
      %s272 = scalar_lea.vmem %s2, %s271
      %s273 = sadd.s32 %s24, 1
      %p274 = scmp.lt.s32.totalorder %s24, 6
      %s275 = scalar_select %p274, %s24, 6
      %s276 = smul.addr %s275, 4
      %s277 = scalar_lea.vmem %s7, %s276
      %p278 = scmp.eq.s32.totalorder %s24, 0
      // Predicated region
      $region45: #{_seq2seq_forward_jit.3} parent=43 // pred_check
        %p279 = pneg %p278
      $region46: #{_seq2seq_forward_jit.3} parent=43 // pred_check_branch
        %281 = sbr.rel (%p279) target = $region48
      $region47: #{_seq2seq_forward_jit.3} parent=43 // pred_region
        %282 = vst [vmem:[#allocation2] sm:$0xf] 0.0
      $region48: #{_seq2seq_forward_jit.3} parent=43 // pred_fallthru
        _
      %s283 = sld [smem:[#allocation4 + %s24]]
      %p284 = scmp.gt.s32.totalorder %s283, 0
      %s285 = scalar_select %p284, 1.0, 0.0
      %v286 = vld [vmem:[%s267] sm:$0xf]
      %v287 = vstv %s285
      %v288 = vmul.f32 %v287, %v286
      %s289 = ssub.f32 1.0, %s285
      %v290 = vld [vmem:[#allocation2] sm:$0xf]
      %v291 = vstv %s289
      %v292 = vmul.f32 %v291, %v290
      %v293 = vadd.f32 %v288, %v292
      %v294 = vld [vmem:[%s3] sm:$0xff]
      %v295 = vld [vmem:[%s3 + $0x8] sm:$0xff]
      %v296 = vld [vmem:[%s3 + $0x10] sm:$0xff]
      %v297 = vld [vmem:[%s3 + $0x18] sm:$0xff]
      %v298 = vld [vmem:[%s3 + $0x20] sm:$0xff]
      %v299 = vld [vmem:[%s3 + $0x28] sm:$0xff]
      %v300 = vld [vmem:[%s3 + $0x30] sm:$0xff]
      %v301 = vld [vmem:[%s3 + $0x38] sm:$0xff]
      %v302 = vld [vmem:[%s3 + $0x40] sm:$0xff]
      %v303 = vld [vmem:[%s3 + $0x48] sm:$0xff]
      %v304 = vld [vmem:[%s3 + $0x50] sm:$0xff]
      %v305 = vld [vmem:[%s3 + $0x58] sm:$0xff]
      %v306 = vld [vmem:[%s3 + $0x60] sm:$0xff]
      %v307 = vld [vmem:[%s3 + $0x68] sm:$0xff]
      %v308 = vld [vmem:[%s3 + $0x70] sm:$0xff]
      %v309 = vld [vmem:[%s3 + $0x78] sm:$0xff]
      %310 = vmatprep.subr.mxu0 0.0
      %311 = vmatpush1.msra.mxu0 %v294
      %312 = vmatprep.subr.mxu0 0.0
      %313 = vmatpush1.msra.mxu0 %v295
      %314 = vmatprep.subr.mxu0 0.0
      %315 = vmatpush1.msra.mxu0 %v296
      %316 = vmatprep.subr.mxu0 0.0
      %317 = vmatpush1.msra.mxu0 %v297
      %318 = vmatprep.subr.mxu0 0.0
      %319 = vmatpush1.msra.mxu0 %v298
      %320 = vmatprep.subr.mxu0 0.0
      %321 = vmatpush1.msra.mxu0 %v299
      %322 = vmatprep.subr.mxu0 0.0
      %323 = vmatpush1.msra.mxu0 %v300
      %324 = vmatprep.subr.mxu0 0.0
      %325 = vmatpush1.msra.mxu0 %v301
      %326 = vmatprep.subr.mxu0 0.0
      %327 = vmatpush1.msra.mxu0 %v302
      %328 = vmatprep.subr.mxu0 0.0
      %329 = vmatpush1.msra.mxu0 %v303
      %330 = vmatprep.subr.mxu0 0.0
      %331 = vmatpush1.msra.mxu0 %v304
      %332 = vmatprep.subr.mxu0 0.0
      %333 = vmatpush1.msra.mxu0 %v305
      %334 = vmatprep.subr.mxu0 0.0
      %335 = vmatpush1.msra.mxu0 %v306
      %336 = vmatprep.subr.mxu0 0.0
      %337 = vmatpush1.msra.mxu0 %v307
      %338 = vmatprep.subr.mxu0 0.0
      %339 = vmatpush1.msra.mxu0 %v308
      %340 = vmatprep.subr.mxu0 0.0
      %341 = vmatpush1.msra.mxu0 %v309
      %342 = vmatprep.subr.mxu0 0.0
      %343 = vmatpush1.msra.mxu0 0.0
      %344 = vmatprep.subr.mxu0 0.0
      %345 = vmatpush1.msra.mxu0 0.0
      %346 = vmatprep.subr.mxu0 0.0
      %347 = vmatpush1.msra.mxu0 0.0
      %348 = vmatprep.subr.mxu0 0.0
      %349 = vmatpush1.msra.mxu0 0.0
      %350 = vmatprep.subr.mxu0 0.0
      %351 = vmatpush1.msra.mxu0 0.0
      %352 = vmatprep.subr.mxu0 0.0
      %353 = vmatpush1.msra.mxu0 0.0
      %354 = vmatprep.subr.mxu0 0.0
      %355 = vmatpush1.msra.mxu0 0.0
      %356 = vmatprep.subr.mxu0 0.0
      %357 = vmatpush1.msra.mxu0 0.0
      %358 = vmatprep.subr.mxu0 0.0
      %359 = vmatpush1.msra.mxu0 0.0
      %360 = vmatprep.subr.mxu0 0.0
      %361 = vmatpush1.msra.mxu0 0.0
      %362 = vmatprep.subr.mxu0 0.0
      %363 = vmatpush1.msra.mxu0 0.0
      %364 = vmatprep.subr.mxu0 0.0
      %365 = vmatpush1.msra.mxu0 0.0
      %366 = vmatprep.subr.mxu0 0.0
      %367 = vmatpush1.msra.mxu0 0.0
      %368 = vmatprep.subr.mxu0 0.0
      %369 = vmatpush1.msra.mxu0 0.0
      %370 = vmatprep.subr.mxu0 0.0
      %371 = vmatpush1.msra.mxu0 0.0
      %372 = vmatprep.subr.mxu0 0.0
      %373 = vmatpush1.msra.mxu0 0.0
      %374 = vmatprep.mubr.f32.mxu0 0.0
      %375 = vmatmul.mubr.f32.gmra.mrb[0].mxu0 %v293
      %v376 = vpop.f32.mrb[0].mxu0
      %v377 = vadd.f32 0.0, %v376
      %v378 = vpop.f32.mrb[0].mxu0
      %379 = vdwg.mxu0
      %v380 = vld [vmem:[%s272] sm:$0xf]
      %v381 = vld [vmem:[%s4] sm:$0xff]
      %v382 = vld [vmem:[%s4 + $0x8] sm:$0xff]
      %v383 = vld [vmem:[%s4 + $0x10] sm:$0xff]
      %v384 = vld [vmem:[%s4 + $0x18] sm:$0xff]
      %vm385 = vcmask 261120
      %v387 = vsel %vm385, %v377, 0
      %389 = vmatprep.subr.mxu0 0.0
      %390 = vmatpush1.msra.mxu0 %v381
      %391 = vmatprep.subr.mxu0 0.0
      %392 = vmatpush1.msra.mxu0 %v382
      %393 = vmatprep.subr.mxu0 0.0
      %394 = vmatpush1.msra.mxu0 %v383
      %395 = vmatprep.subr.mxu0 0.0
      %396 = vmatpush1.msra.mxu0 %v384
      %397 = vmatprep.subr.mxu0 0.0
      %398 = vmatpush1.msra.mxu0 0.0
      %399 = vmatprep.subr.mxu0 0.0
      %400 = vmatpush1.msra.mxu0 0.0
      %401 = vmatprep.subr.mxu0 0.0
      %402 = vmatpush1.msra.mxu0 0.0
      %403 = vmatprep.subr.mxu0 0.0
      %404 = vmatpush1.msra.mxu0 0.0
      %405 = vmatprep.subr.mxu0 0.0
      %406 = vmatpush1.msra.mxu0 0.0
      %407 = vmatprep.subr.mxu0 0.0
      %408 = vmatpush1.msra.mxu0 0.0
      %409 = vmatprep.subr.mxu0 0.0
      %410 = vmatpush1.msra.mxu0 0.0
      %411 = vmatprep.subr.mxu0 0.0
      %412 = vmatpush1.msra.mxu0 0.0
      %413 = vmatprep.subr.mxu0 0.0
      %414 = vmatpush1.msra.mxu0 0.0
      %415 = vmatprep.subr.mxu0 0.0
      %416 = vmatpush1.msra.mxu0 0.0
      %417 = vmatprep.subr.mxu0 0.0
      %418 = vmatpush1.msra.mxu0 0.0
      %419 = vmatprep.subr.mxu0 0.0
      %420 = vmatpush1.msra.mxu0 0.0
      %421 = vmatprep.subr.mxu0 0.0
      %422 = vmatpush1.msra.mxu0 0.0
      %423 = vmatprep.subr.mxu0 0.0
      %424 = vmatpush1.msra.mxu0 0.0
      %425 = vmatprep.subr.mxu0 0.0
      %426 = vmatpush1.msra.mxu0 0.0
      %427 = vmatprep.subr.mxu0 0.0
      %428 = vmatpush1.msra.mxu0 0.0
      %429 = vmatprep.subr.mxu0 0.0
      %430 = vmatpush1.msra.mxu0 0.0
      %431 = vmatprep.subr.mxu0 0.0
      %432 = vmatpush1.msra.mxu0 0.0
      %433 = vmatprep.subr.mxu0 0.0
      %434 = vmatpush1.msra.mxu0 0.0
      %435 = vmatprep.subr.mxu0 0.0
      %436 = vmatpush1.msra.mxu0 0.0
      %437 = vmatprep.subr.mxu0 0.0
      %438 = vmatpush1.msra.mxu0 0.0
      %439 = vmatprep.subr.mxu0 0.0
      %440 = vmatpush1.msra.mxu0 0.0
      %441 = vmatprep.subr.mxu0 0.0
      %442 = vmatpush1.msra.mxu0 0.0
      %443 = vmatprep.subr.mxu0 0.0
      %444 = vmatpush1.msra.mxu0 0.0
      %445 = vmatprep.subr.mxu0 0.0
      %446 = vmatpush1.msra.mxu0 0.0
      %447 = vmatprep.subr.mxu0 0.0
      %448 = vmatpush1.msra.mxu0 0.0
      %449 = vmatprep.subr.mxu0 0.0
      %450 = vmatpush1.msra.mxu0 0.0
      %451 = vmatprep.subr.mxu0 0.0
      %452 = vmatpush1.msra.mxu0 0.0
      %453 = vmatprep.mubr.f32.mxu0 0.0
      %454 = vmatmul.mubr.f32.gmra.mrb[0].mxu0 %v387
      %v455 = vpop.f32.mrb[0].mxu0
      %v456 = vadd.f32 0.0, %v455
      %v457 = vpop.f32.mrb[0].mxu0
      %458 = vdwg.mxu0
      %v459 = vadd.f32 %v380, %v456
      %v460 = vtanh.pop %v459
      %v461 = vld [vmem:[%s5] sm:$0xff]
      %v462 = vld [vmem:[%s5 + $0x8] sm:$0xff]
      %v463 = vld [vmem:[%s5 + $0x10] sm:$0xff]
      %v464 = vld [vmem:[%s5 + $0x18] sm:$0xff]
      %v465 = vld [vmem:[%s6] sm:$0x1]
      %v467 = vlaneseq
      %v468 = vshrl.u32 %v467, 7
      %v469 = vsub.s32 0, %v468
      %v470 = vrot.slane %v465, %v469
      %v473 = vsel %vm385, %v460, 0
      %475 = vmatprep.subr.mxu0 0.0
      %476 = vmatpush1.msra.mxu0 %v461
      %477 = vmatprep.subr.mxu0 0.0
      %478 = vmatpush1.msra.mxu0 %v462
      %479 = vmatprep.subr.mxu0 0.0
      %480 = vmatpush1.msra.mxu0 %v463
      %481 = vmatprep.subr.mxu0 0.0
      %482 = vmatpush1.msra.mxu0 %v464
      %483 = vmatprep.subr.mxu0 0.0
      %484 = vmatpush1.msra.mxu0 0.0
      %485 = vmatprep.subr.mxu0 0.0
      %486 = vmatpush1.msra.mxu0 0.0
      %487 = vmatprep.subr.mxu0 0.0
      %488 = vmatpush1.msra.mxu0 0.0
      %489 = vmatprep.subr.mxu0 0.0
      %490 = vmatpush1.msra.mxu0 0.0
      %491 = vmatprep.subr.mxu0 0.0
      %492 = vmatpush1.msra.mxu0 0.0
      %493 = vmatprep.subr.mxu0 0.0
      %494 = vmatpush1.msra.mxu0 0.0
      %495 = vmatprep.subr.mxu0 0.0
      %496 = vmatpush1.msra.mxu0 0.0
      %497 = vmatprep.subr.mxu0 0.0
      %498 = vmatpush1.msra.mxu0 0.0
      %499 = vmatprep.subr.mxu0 0.0
      %500 = vmatpush1.msra.mxu0 0.0
      %501 = vmatprep.subr.mxu0 0.0
      %502 = vmatpush1.msra.mxu0 0.0
      %503 = vmatprep.subr.mxu0 0.0
      %504 = vmatpush1.msra.mxu0 0.0
      %505 = vmatprep.subr.mxu0 0.0
      %506 = vmatpush1.msra.mxu0 0.0
      %507 = vmatprep.subr.mxu0 0.0
      %508 = vmatpush1.msra.mxu0 0.0
      %509 = vmatprep.subr.mxu0 0.0
      %510 = vmatpush1.msra.mxu0 0.0
      %511 = vmatprep.subr.mxu0 0.0
      %512 = vmatpush1.msra.mxu0 0.0
      %513 = vmatprep.subr.mxu0 0.0
      %514 = vmatpush1.msra.mxu0 0.0
      %515 = vmatprep.subr.mxu0 0.0
      %516 = vmatpush1.msra.mxu0 0.0
      %517 = vmatprep.subr.mxu0 0.0
      %518 = vmatpush1.msra.mxu0 0.0
      %519 = vmatprep.subr.mxu0 0.0
      %520 = vmatpush1.msra.mxu0 0.0
      %521 = vmatprep.subr.mxu0 0.0
      %522 = vmatpush1.msra.mxu0 0.0
      %523 = vmatprep.subr.mxu0 0.0
      %524 = vmatpush1.msra.mxu0 0.0
      %525 = vmatprep.subr.mxu0 0.0
      %526 = vmatpush1.msra.mxu0 0.0
      %527 = vmatprep.subr.mxu0 0.0
      %528 = vmatpush1.msra.mxu0 0.0
      %529 = vmatprep.subr.mxu0 0.0
      %530 = vmatpush1.msra.mxu0 0.0
      %531 = vmatprep.subr.mxu0 0.0
      %532 = vmatpush1.msra.mxu0 0.0
      %533 = vmatprep.subr.mxu0 0.0
      %534 = vmatpush1.msra.mxu0 0.0
      %535 = vmatprep.subr.mxu0 0.0
      %536 = vmatpush1.msra.mxu0 0.0
      %537 = vmatprep.subr.mxu0 0.0
      %538 = vmatpush1.msra.mxu0 0.0
      %539 = vmatprep.mubr.f32.mxu0 0.0
      %540 = vmatmul.mubr.f32.gmra.mrb[0].mxu0 %v473
      %v541 = vpop.f32.mrb[0].mxu0
      %v542 = vadd.f32 %v470, %v541
      %v543 = vpop.f32.mrb[0].mxu0
      %544 = vdwg.mxu0
      %545 = vst [vmem:[%s277] sm:$0xf] %v542
      %vm546 = vcmask 1043456
      %v547 = vsel %vm546, %v542, -inf
      %548 = vmax.xlane.f32.xlu0 %v547
      %v549 = vpop.xlane.xlu0 %548
      %v550 = vlaneseq
      %v551 = vand.u32 %v550, 127
      %vm552 = vcmp.eq.f32.partialorder %v542, %v549
      %v553 = vsel %vm552, %v551, 128
      %v554 = vsel %vm546, %v553, 2147483647
      %v555 = vand.u32 %v554, 65535
      %v556 = vshra.s32 %v554, 16
      %v557 = vcvt.s32.f32 %v555
      %v558 = vcvt.s32.f32 %v556
      %559 = vmin.xlane.f32.xlu0 %v558
      %v560 = vpop.xlane.xlu0 %559
      %vm561 = vcmp.eq.f32.partialorder %v558, %v560
      %v562 = vsel %vm561, %v557, inf
      %563 = vmin.xlane.f32.xlu0 %v562
      %v564 = vpop.xlane.xlu0 %563
      %v565 = vcvt.f32.s32 %v564
      %v566 = vcvt.f32.s32 %v560
      %v567 = vshll.u32 %v566, 16
      %v568 = vadd.s32 %v567, %v565
      %vm569 = vcmp.eq.s32.totalorder %v551, %v568
      %v570 = vsel %vm569, 1, 0
      %v571 = vcvt.s32.f32 %v570
      %572 = vst [vmem:[#allocation2] sm:$0xf] %v571
      %p573 = scmp.lt.s32.totalorder %s24, 6
      %s574 = scalar_select %p573, %s24, 6
      %s575 = smul.addr %s574, 4
      %s576 = scalar_lea.vmem %s7, %s575
      // Predicated region
      $region49: #{_seq2seq_forward_jit.3} parent=43 // pred_check
        %p577 = pneg %p180
      $region50: #{_seq2seq_forward_jit.3} parent=43 // pred_check_branch
        %579 = sbr.rel (%p577) target = $region52
      $region51: #{_seq2seq_forward_jit.3} parent=43 // pred_region
        _
      $region52: #{_seq2seq_forward_jit.3} parent=43 // pred_fallthru
        _
    $region44: #{_seq2seq_forward_jit.3} parent=5 // pred_fallthru
      _
    %p580 = scmp.le.s32.totalorder 2, %s19
    // Predicated region
    $region53: #{_seq2seq_forward_jit.3} parent=5 // pred_check
      %p581 = pneg %p580
    $region54: #{_seq2seq_forward_jit.3} parent=5 // pred_check_branch
      %583 = sbr.rel (%p581) target = $region56
    $region55: #{_seq2seq_forward_jit.3} parent=5 // pred_region
      %s584 = ssub.s32 %s19, 2
      // Predicated region
      $region57: #{_seq2seq_forward_jit.3} parent=55 // pred_check
        %p585 = pneg %p186
      $region58: #{_seq2seq_forward_jit.3} parent=55 // pred_check_branch
        %587 = sbr.rel (%p585) target = $region60
      $region59: #{_seq2seq_forward_jit.3} parent=55 // pred_region
        %p588 = scmp.lt.s32.totalorder %s25, 6
        %s589 = scalar_select %p588, %s25, 6
        %s590 = smul.addr %s589, 4
        %s591 = scalar_lea.vmem %s7, %s590
      $region60: #{_seq2seq_forward_jit.3} parent=55 // pred_fallthru
        _
    $region56: #{_seq2seq_forward_jit.3} parent=5 // pred_fallthru
      _
  $region6: #{_seq2seq_forward_jit.3} parent=0 // loop_footer
    %s23 = sadd.s32 1, %s19
  $region7: #{_seq2seq_forward_jit.3} parent=0 // loop_footer_branch
    %18 = sbr.rel target = $region3
  $region8: #{_seq2seq_forward_jit.3} parent=0 // loop_exit
    _

// kernel: _seq2seq_forward_jit.2
$region0: #{_seq2seq_forward_jit.2}
  #allocation0 [shape = 'u32[]', space=smem, size = 0x4, offset = 0x4, fixed_abs, tag = 'smem constant byte address 0x4 - core index']
  #allocation1 [shape = 'u32[144,128]{1,0:T(1,128)}', space=vmem, size = 0x12000, scoped, tag = 'internal scratch']
  %s0 = inlined_call_operand.vmem [shape: f32[40,32], index: 0, kind: input, shape index: {}]
  %s1 = inlined_call_operand.vmem [shape: f32[32,32], index: 1, kind: input, shape index: {}]
  %s2 = inlined_call_operand.vmem [shape: f32[1,32], index: 2, kind: input, shape index: {}]
  %s3 = inlined_call_operand.vmem [shape: f32[32,32], index: 3, kind: input, shape index: {}]
  %s4 = inlined_call_operand.vmem [shape: f32[1,32], index: 4, kind: input, shape index: {}]
  %s5 = inlined_call_operand.vmem [shape: f32[40,32], index: 5, kind: output, shape index: {}]
  %s6 = sld [smem:[#allocation0]]
  $region30: #{_seq2seq_forward_jit.2} parent=0
    _
  %s8 = ssub.s32 1, %s6
  %s9 = scalar_select 0, %s8, %s6
  // Predicated region
  $region2: #{_seq2seq_forward_jit.2} parent=0 // pred_check
    _
  $region3: #{_seq2seq_forward_jit.2} parent=0 // pred_check_branch
    %11 = sbr.rel (0) target = $region5
  $region4: #{_seq2seq_forward_jit.2} parent=0 // pred_region
    _
  $region5: #{_seq2seq_forward_jit.2} parent=0 // pred_fallthru
    _
  // Predicated region
  $region6: #{_seq2seq_forward_jit.2} parent=0 // pred_check
    _
  $region7: #{_seq2seq_forward_jit.2} parent=0 // pred_check_branch
    %13 = sbr.rel (0) target = $region9
  $region8: #{_seq2seq_forward_jit.2} parent=0 // pred_region
    _
  $region9: #{_seq2seq_forward_jit.2} parent=0 // pred_fallthru
    _
  // Predicated region
  $region10: #{_seq2seq_forward_jit.2} parent=0 // pred_check
    _
  $region11: #{_seq2seq_forward_jit.2} parent=0 // pred_check_branch
    %15 = sbr.rel (0) target = $region13
  $region12: #{_seq2seq_forward_jit.2} parent=0 // pred_region
    _
  $region13: #{_seq2seq_forward_jit.2} parent=0 // pred_fallthru
    _
  // Predicated region
  $region14: #{_seq2seq_forward_jit.2} parent=0 // pred_check
    _
  $region15: #{_seq2seq_forward_jit.2} parent=0 // pred_check_branch
    %17 = sbr.rel (0) target = $region17
  $region16: #{_seq2seq_forward_jit.2} parent=0 // pred_region
    _
  $region17: #{_seq2seq_forward_jit.2} parent=0 // pred_fallthru
    _
  // Predicated region
  $region18: #{_seq2seq_forward_jit.2} parent=0 // pred_check
    _
  $region19: #{_seq2seq_forward_jit.2} parent=0 // pred_check_branch
    %19 = sbr.rel (0) target = $region21
  $region20: #{_seq2seq_forward_jit.2} parent=0 // pred_region
    _
  $region21: #{_seq2seq_forward_jit.2} parent=0 // pred_fallthru
    _
  %v20 = vld [vmem:[%s0] sm:$0xff]
  %v21 = vld [vmem:[%s0 + $0x8] sm:$0xff]
  %v22 = vld [vmem:[%s0 + $0x10] sm:$0xff]
  %v23 = vld [vmem:[%s0 + $0x18] sm:$0xff]
  %v24 = vld [vmem:[%s0 + $0x20] sm:$0xff]
  %v25 = vld [vmem:[%s1] sm:$0xff]
  %v26 = vld [vmem:[%s1 + $0x8] sm:$0xff]
  %v27 = vld [vmem:[%s1 + $0x10] sm:$0xff]
  %v28 = vld [vmem:[%s1 + $0x18] sm:$0xff]
  %v29 = vld [vmem:[%s2] sm:$0x1]
  %v31 = vlaneseq
  %v32 = vshrl.u32 %v31, 7
  %v33 = vsub.s32 0, %v32
  %v34 = vrot.slane %v29, %v33
  %vm36 = vcmask 261120
  %v38 = vsel %vm36, %v20, 0
  %v41 = vsel %vm36, %v21, 0
  %v44 = vsel %vm36, %v22, 0
  %v47 = vsel %vm36, %v23, 0
  %v50 = vsel %vm36, %v24, 0
  %52 = vmatprep.subr.mxu0 0.0
  %53 = vmatpush1.msra.mxu0 %v25
  %54 = vmatprep.subr.mxu0 0.0
  %55 = vmatpush1.msra.mxu0 %v26
  %56 = vmatprep.subr.mxu0 0.0
  %57 = vmatpush1.msra.mxu0 %v27
  %58 = vmatprep.subr.mxu0 0.0
  %59 = vmatpush1.msra.mxu0 %v28
  %60 = vmatprep.subr.mxu0 0.0
  %61 = vmatpush1.msra.mxu0 0.0
  %62 = vmatprep.subr.mxu0 0.0
  %63 = vmatpush1.msra.mxu0 0.0
  %64 = vmatprep.subr.mxu0 0.0
  %65 = vmatpush1.msra.mxu0 0.0
  %66 = vmatprep.subr.mxu0 0.0
  %67 = vmatpush1.msra.mxu0 0.0
  %68 = vmatprep.subr.mxu0 0.0
  %69 = vmatpush1.msra.mxu0 0.0
  %70 = vmatprep.subr.mxu0 0.0
  %71 = vmatpush1.msra.mxu0 0.0
  %72 = vmatprep.subr.mxu0 0.0
  %73 = vmatpush1.msra.mxu0 0.0
  %74 = vmatprep.subr.mxu0 0.0
  %75 = vmatpush1.msra.mxu0 0.0
  %76 = vmatprep.subr.mxu0 0.0
  %77 = vmatpush1.msra.mxu0 0.0
  %78 = vmatprep.subr.mxu0 0.0
  %79 = vmatpush1.msra.mxu0 0.0
  %80 = vmatprep.subr.mxu0 0.0
  %81 = vmatpush1.msra.mxu0 0.0
  %82 = vmatprep.subr.mxu0 0.0
  %83 = vmatpush1.msra.mxu0 0.0
  %84 = vmatprep.subr.mxu0 0.0
  %85 = vmatpush1.msra.mxu0 0.0
  %86 = vmatprep.subr.mxu0 0.0
  %87 = vmatpush1.msra.mxu0 0.0
  %88 = vmatprep.subr.mxu0 0.0
  %89 = vmatpush1.msra.mxu0 0.0
  %90 = vmatprep.subr.mxu0 0.0
  %91 = vmatpush1.msra.mxu0 0.0
  %92 = vmatprep.subr.mxu0 0.0
  %93 = vmatpush1.msra.mxu0 0.0
  %94 = vmatprep.subr.mxu0 0.0
  %95 = vmatpush1.msra.mxu0 0.0
  %96 = vmatprep.subr.mxu0 0.0
  %97 = vmatpush1.msra.mxu0 0.0
  %98 = vmatprep.subr.mxu0 0.0
  %99 = vmatpush1.msra.mxu0 0.0
  %100 = vmatprep.subr.mxu0 0.0
  %101 = vmatpush1.msra.mxu0 0.0
  %102 = vmatprep.subr.mxu0 0.0
  %103 = vmatpush1.msra.mxu0 0.0
  %104 = vmatprep.subr.mxu0 0.0
  %105 = vmatpush1.msra.mxu0 0.0
  %106 = vmatprep.subr.mxu0 0.0
  %107 = vmatpush1.msra.mxu0 0.0
  %108 = vmatprep.subr.mxu0 0.0
  %109 = vmatpush1.msra.mxu0 0.0
  %110 = vmatprep.subr.mxu0 0.0
  %111 = vmatpush1.msra.mxu0 0.0
  %112 = vmatprep.subr.mxu0 0.0
  %113 = vmatpush1.msra.mxu0 0.0
  %114 = vmatprep.subr.mxu0 0.0
  %115 = vmatpush1.msra.mxu0 0.0
  %116 = vmatprep.mubr.f32.mxu0 0.0
  %117 = vmatmul.mubr.f32.gmra.mrb[0].mxu0 %v38
  %v118 = vpop.f32.mrb[0].mxu0
  %v119 = vadd.f32 %v34, %v118
  %v120 = vpop.f32.mrb[0].mxu0
  %121 = vmatprep.mubr.f32.mxu0 0.0
  %122 = vmatmul.mubr.f32.gmra.mrb[0].mxu0 %v41
  %v123 = vpop.f32.mrb[0].mxu0
  %v124 = vadd.f32 %v34, %v123
  %v125 = vpop.f32.mrb[0].mxu0
  %126 = vmatprep.mubr.f32.mxu0 0.0
  %127 = vmatmul.mubr.f32.gmra.mrb[0].mxu0 %v44
  %v128 = vpop.f32.mrb[0].mxu0
  %v129 = vadd.f32 %v34, %v128
  %v130 = vpop.f32.mrb[0].mxu0
  %131 = vmatprep.mubr.f32.mxu0 0.0
  %132 = vmatmul.mubr.f32.gmra.mrb[0].mxu0 %v47
  %v133 = vpop.f32.mrb[0].mxu0
  %v134 = vadd.f32 %v34, %v133
  %v135 = vpop.f32.mrb[0].mxu0
  %136 = vmatprep.mubr.f32.mxu0 0.0
  %137 = vmatmul.mubr.f32.gmra.mrb[0].mxu0 %v50
  %v138 = vpop.f32.mrb[0].mxu0
  %v139 = vadd.f32 %v34, %v138
  %v140 = vpop.f32.mrb[0].mxu0
  %141 = vdwg.mxu0
  %v142 = vtanh.pop %v119
  %v143 = vtanh.pop %v124
  %v144 = vtanh.pop %v129
  %v145 = vtanh.pop %v134
  %v146 = vtanh.pop %v139
  %v147 = vld [vmem:[%s3] sm:$0xff]
  %v148 = vld [vmem:[%s3 + $0x8] sm:$0xff]
  %v149 = vld [vmem:[%s3 + $0x10] sm:$0xff]
  %v150 = vld [vmem:[%s3 + $0x18] sm:$0xff]
  %v151 = vld [vmem:[%s4] sm:$0x1]
  %v153 = vlaneseq
  %v154 = vshrl.u32 %v153, 7
  %v155 = vsub.s32 0, %v154
  %v156 = vrot.slane %v151, %v155
  %v159 = vsel %vm36, %v142, 0
  %v162 = vsel %vm36, %v143, 0
  %v165 = vsel %vm36, %v144, 0
  %v168 = vsel %vm36, %v145, 0
  %v171 = vsel %vm36, %v146, 0
  %173 = vmatprep.subr.mxu0 0.0
  %174 = vmatpush1.msra.mxu0 %v147
  %175 = vmatprep.subr.mxu0 0.0
  %176 = vmatpush1.msra.mxu0 %v148
  %177 = vmatprep.subr.mxu0 0.0
  %178 = vmatpush1.msra.mxu0 %v149
  %179 = vmatprep.subr.mxu0 0.0
  %180 = vmatpush1.msra.mxu0 %v150
  %181 = vmatprep.subr.mxu0 0.0
  %182 = vmatpush1.msra.mxu0 0.0
  %183 = vmatprep.subr.mxu0 0.0
  %184 = vmatpush1.msra.mxu0 0.0
  %185 = vmatprep.subr.mxu0 0.0
  %186 = vmatpush1.msra.mxu0 0.0
  %187 = vmatprep.subr.mxu0 0.0
  %188 = vmatpush1.msra.mxu0 0.0
  %189 = vmatprep.subr.mxu0 0.0
  %190 = vmatpush1.msra.mxu0 0.0
  %191 = vmatprep.subr.mxu0 0.0
  %192 = vmatpush1.msra.mxu0 0.0
  %193 = vmatprep.subr.mxu0 0.0
  %194 = vmatpush1.msra.mxu0 0.0
  %195 = vmatprep.subr.mxu0 0.0
  %196 = vmatpush1.msra.mxu0 0.0
  %197 = vmatprep.subr.mxu0 0.0
  %198 = vmatpush1.msra.mxu0 0.0
  %199 = vmatprep.subr.mxu0 0.0
  %200 = vmatpush1.msra.mxu0 0.0
  %201 = vmatprep.subr.mxu0 0.0
  %202 = vmatpush1.msra.mxu0 0.0
  %203 = vmatprep.subr.mxu0 0.0
  %204 = vmatpush1.msra.mxu0 0.0
  %205 = vmatprep.subr.mxu0 0.0
  %206 = vmatpush1.msra.mxu0 0.0
  %207 = vmatprep.subr.mxu0 0.0
  %208 = vmatpush1.msra.mxu0 0.0
  %209 = vmatprep.subr.mxu0 0.0
  %210 = vmatpush1.msra.mxu0 0.0
  %211 = vmatprep.subr.mxu0 0.0
  %212 = vmatpush1.msra.mxu0 0.0
  %213 = vmatprep.subr.mxu0 0.0
  %214 = vmatpush1.msra.mxu0 0.0
  %215 = vmatprep.subr.mxu0 0.0
  %216 = vmatpush1.msra.mxu0 0.0
  %217 = vmatprep.subr.mxu0 0.0
  %218 = vmatpush1.msra.mxu0 0.0
  %219 = vmatprep.subr.mxu0 0.0
  %220 = vmatpush1.msra.mxu0 0.0
  %221 = vmatprep.subr.mxu0 0.0
  %222 = vmatpush1.msra.mxu0 0.0
  %223 = vmatprep.subr.mxu0 0.0
  %224 = vmatpush1.msra.mxu0 0.0
  %225 = vmatprep.subr.mxu0 0.0
  %226 = vmatpush1.msra.mxu0 0.0
  %227 = vmatprep.subr.mxu0 0.0
  %228 = vmatpush1.msra.mxu0 0.0
  %229 = vmatprep.subr.mxu0 0.0
  %230 = vmatpush1.msra.mxu0 0.0
  %231 = vmatprep.subr.mxu0 0.0
  %232 = vmatpush1.msra.mxu0 0.0
  %233 = vmatprep.subr.mxu0 0.0
  %234 = vmatpush1.msra.mxu0 0.0
  %235 = vmatprep.subr.mxu0 0.0
  %236 = vmatpush1.msra.mxu0 0.0
  %237 = vmatprep.mubr.f32.mxu0 0.0
  %238 = vmatmul.mubr.f32.gmra.mrb[0].mxu0 %v159
  %v239 = vpop.f32.mrb[0].mxu0
  %v240 = vadd.f32 %v156, %v239
  %v241 = vpop.f32.mrb[0].mxu0
  %242 = vmatprep.mubr.f32.mxu0 0.0
  %243 = vmatmul.mubr.f32.gmra.mrb[0].mxu0 %v162
  %v244 = vpop.f32.mrb[0].mxu0
  %v245 = vadd.f32 %v156, %v244
  %v246 = vpop.f32.mrb[0].mxu0
  %247 = vmatprep.mubr.f32.mxu0 0.0
  %248 = vmatmul.mubr.f32.gmra.mrb[0].mxu0 %v165
  %v249 = vpop.f32.mrb[0].mxu0
  %v250 = vadd.f32 %v156, %v249
  %v251 = vpop.f32.mrb[0].mxu0
  %252 = vmatprep.mubr.f32.mxu0 0.0
  %253 = vmatmul.mubr.f32.gmra.mrb[0].mxu0 %v168
  %v254 = vpop.f32.mrb[0].mxu0
  %v255 = vadd.f32 %v156, %v254
  %v256 = vpop.f32.mrb[0].mxu0
  %257 = vmatprep.mubr.f32.mxu0 0.0
  %258 = vmatmul.mubr.f32.gmra.mrb[0].mxu0 %v171
  %v259 = vpop.f32.mrb[0].mxu0
  %v260 = vadd.f32 %v156, %v259
  %v261 = vpop.f32.mrb[0].mxu0
  %262 = vdwg.mxu0
  %263 = vst.msk [vmem:[%s5] sm:$0xff] %vm36, %v240
  %264 = vst.msk [vmem:[%s5 + $0x8] sm:$0xff] %vm36, %v245
  %265 = vst.msk [vmem:[%s5 + $0x10] sm:$0xff] %vm36, %v250
  %266 = vst.msk [vmem:[%s5 + $0x18] sm:$0xff] %vm36, %v255
  %267 = vst.msk [vmem:[%s5 + $0x20] sm:$0xff] %vm36, %v260
  // Predicated region
  $region22: #{_seq2seq_forward_jit.2} parent=0 // pred_check
    _
  $region23: #{_seq2seq_forward_jit.2} parent=0 // pred_check_branch
    %269 = sbr.rel (0) target = $region25
  $region24: #{_seq2seq_forward_jit.2} parent=0 // pred_region
    _
  $region25: #{_seq2seq_forward_jit.2} parent=0 // pred_fallthru
    _
  // Predicated region
  $region26: #{_seq2seq_forward_jit.2} parent=0 // pred_check
    _
  $region27: #{_seq2seq_forward_jit.2} parent=0 // pred_check_branch
    %271 = sbr.rel (0) target = $region29
  $region28: #{_seq2seq_forward_jit.2} parent=0 // pred_region
    _
  $region29: #{_seq2seq_forward_jit.2} parent=0 // pred_fallthru
    _

</llo_original>
